<compile_context>
chip_gen: v7x
topology: tpu7x:2x2x1
jax: 0.10.0
libtpu: 0.0.40
codegen_flags: <defaults>
</compile_context>

<pallas_src>
import functools

import numpy as np
import jax
import jax.numpy as jnp
from jax.experimental import pallas as pl
from jax.experimental.pallas import tpu as pltpu

F_PAD = 128            # lane padding: h_dim / a_dim padded to 128
SUBLANE = 8            # f32 sublane granularity
N_LAYERS = 4
DEFAULT_BLOCK_B = 1024  # batch rows per grid step (raised per perf review)


def _round_up(x, m):
    return (x + m - 1) // m * m


def _pi_net_kernel(s_dim, a_dim, x_ref, w_ref, out_ref):
    """x_ref: (blk, s_dim) f32; w_ref: (4, 128, 128) f32/bf16; out_ref: (blk, 128) f32.

    Weight layout (see prepare_params): layer l's W.T sits in rows [:in_f], its bias in
    row 127, and hidden layers carry a 1.0 at [127, 127] so h[:, 127] stays exactly 1.0
    through the ReLUs (bias folding via a constant-1 lane).
    """
    x = x_ref[...]                                              # (blk, s_dim) f32

    # ---- layer 0 on the VPU (s_dim is tiny: MountainCar has s_dim == 2) ----
    # h = b0 + sum_j x[:, j] * W0.T[j, :]; bias row's lane 127 is 1.0 -> carry lane.
    h = w_ref[0, F_PAD - 1:F_PAD, :].astype(jnp.float32)        # (1, 128) bias row
    for j in range(s_dim):                                      # static unroll
        h = h + x[:, j:j + 1] * w_ref[0, j:j + 1, :].astype(jnp.float32)
    h = jnp.maximum(h, 0.0)                                     # (blk, 128)

    # ---- layers 1..3 on the MXU (bias folded; accumulate in f32) ----
    for layer in range(1, N_LAYERS):
        w = w_ref[layer]                                        # (128, 128), stack dtype
        h = jnp.dot(h.astype(w.dtype), w, preferred_element_type=jnp.float32)
        if layer < N_LAYERS - 1:
            h = jnp.maximum(h, 0.0)                             # keeps carry lane at 1.0
    logits = h

    # ---- masked softmax over the first a_dim lanes ----
    lane = jax.lax.broadcasted_iota(jnp.int32, logits.shape, 1)
    valid = lane < a_dim
    masked = jnp.where(valid, logits, -jnp.inf)
    m = jnp.max(masked, axis=-1, keepdims=True)
    e = jnp.where(valid, jnp.exp(masked - m), 0.0)
    denom = jnp.sum(e, axis=-1, keepdims=True)

    inv = pl.reciprocal(denom, approx=True)    # EUP slot (cheap)
    inv = inv * (2.0 - denom * inv)            # Newton step 1
    inv = inv * (2.0 - denom * inv)            # Newton step 2 -> f32-exact
    out_ref[...] = e * inv


@functools.lru_cache(maxsize=None)
def _build_pi_net_call(s_dim, a_dim, block_b, n_blocks, w_dtype_name):
    """Build the pallas_call once per static configuration."""
    b_pad = n_blocks * block_b
    w_itemsize = jnp.dtype(w_dtype_name).itemsize
    flops = 2 * b_pad * F_PAD * (s_dim + (N_LAYERS - 1) * F_PAD)
    bytes_accessed = (b_pad * s_dim * 4                      # states in
                      + b_pad * F_PAD * 4                    # probs out
                      + N_LAYERS * F_PAD * F_PAD * w_itemsize)  # resident weights

    return pl.pallas_call(
        functools.partial(_pi_net_kernel, s_dim, a_dim),
        out_shape=jax.ShapeDtypeStruct((b_pad, F_PAD), jnp.float32),
        grid_spec=pltpu.PrefetchScalarGridSpec(
            num_scalar_prefetch=0,
            grid=(n_blocks,),
            in_specs=[
                # Activations pipeline over the batch grid; last dim == full array dim.
                pl.BlockSpec((block_b, s_dim), lambda i: (i, 0)),
                # Weight stack: constant block index -> VMEM-resident; single-buffered.
                pl.BlockSpec((N_LAYERS, F_PAD, F_PAD), lambda i: (0, 0, 0),
                             pipeline_mode=pl.Buffered(1)),
            ],
            out_specs=pl.BlockSpec((block_b, F_PAD), lambda i: (i, 0)),
        ),
        compiler_params=pltpu.CompilerParams(
            dimension_semantics=("parallel",),
            vmem_limit_bytes=32 * 1024 * 1024),
        cost_estimate=pl.CostEstimate(
            flops=flops,
            transcendentals=b_pad * F_PAD,
            bytes_accessed=bytes_accessed),
    )


def prepare_params(params, mxu_dtype=jnp.float32):
    """Pad, transpose, bias-fold and stack the four Linear layers ONCE (off hot path).

    params: list of (W(out,in), b(out,)) as in PyTorch's nn.Linear (forward: x @ W.T + b).
    mxu_dtype: jnp.float32 (exact, default) or jnp.bfloat16 (fast MXU path; ~1e-3 err).
    Returns a single (4, 128, 128) weight stack.
    """
    assert len(params) == N_LAYERS
    w_np = np.zeros((N_LAYERS, F_PAD, F_PAD), np.float32)
    for i, (w, b) in enumerate(params):
        w = np.asarray(w, np.float32)
        b = np.asarray(b, np.float32)
        out_f, in_f = w.shape
        w_np[i, :in_f, :out_f] = w.T                 # store W.T zero-padded
        w_np[i, F_PAD - 1, :out_f] = b               # bias folded into last row
        if i < N_LAYERS - 1:
            w_np[i, F_PAD - 1, F_PAD - 1] = 1.0      # carry: keeps h[:,127] == 1 thru ReLU
    return jnp.asarray(w_np, mxu_dtype)


@functools.partial(jax.jit, static_argnames=("a_dim", "block_b"))
def pi_net_forward_batched(states, w_stack, *, a_dim, block_b=DEFAULT_BLOCK_B):
    """states: (B, s_dim) float array. Returns (B, a_dim) softmax probabilities."""
    B, s_dim = states.shape
    block_b = max(SUBLANE, _round_up(block_b, SUBLANE))
    rows = _round_up(B, SUBLANE)
    if rows >= 2 * SUBLANE:
        # Prefer >= 2 blocks so the "parallel" batch axis shards across v7x's 2 TCs;
        # the extra grid step costs ~0.35 us on 1-TC chips (negligible).
        blk = min(block_b, _round_up((rows + 1) // 2, SUBLANE))
    else:
        blk = rows
    b_pad = _round_up(rows, blk)

    x = jnp.pad(states.astype(jnp.float32), ((0, b_pad - B), (0, 0)))
    call = _build_pi_net_call(s_dim, a_dim, blk, b_pad // blk,
                              jnp.dtype(w_stack.dtype).name)
    out = call(x, w_stack)
    return out[:B, :a_dim]


def pi_net_forward(state, w_stack, a_dim):
    """Single 1-D state: matches the PyTorch module's forward(state) semantics
    (softmax over dim 0 of the 1-D logits == softmax over actions)."""
    return pi_net_forward_batched(state[None, :], w_stack, a_dim=a_dim)[0]


def _init_linear(key, in_f, out_f):
    # Deterministic init mimicking PyTorch's default U(-1/sqrt(fan_in), 1/sqrt(fan_in)).
    kw, kb = jax.random.split(key)
    bound = 1.0 / float(np.sqrt(in_f))
    w = jax.random.uniform(kw, (out_f, in_f), jnp.float32, -bound, bound)
    b = jax.random.uniform(kb, (out_f,), jnp.float32, -bound, bound)
    return w, b


def _reference_forward(states_np, params_np):
    """float64 numpy reference of the PyTorch forward pass (1-D or (B, s_dim))."""
    h = np.asarray(states_np, np.float64)
    for i, (w, b) in enumerate(params_np):
        h = h @ np.asarray(w, np.float64).T + np.asarray(b, np.float64)
        if i < len(params_np) - 1:
            h = np.maximum(h, 0.0)
    e = np.exp(h - h.max(axis=-1, keepdims=True))
    return e / e.sum(axis=-1, keepdims=True)


if __name__ == "__main__":
    s_dim, h_dim, a_dim = 2, 32, 3   # MountainCar-style policy net
    batch = 4

    key = jax.random.PRNGKey(0)
    k_state, k0, k1, k2, k3 = jax.random.split(key, 5)
    params = [
        _init_linear(k0, s_dim, h_dim),
        _init_linear(k1, h_dim, h_dim),
        _init_linear(k2, h_dim, h_dim),
        _init_linear(k3, h_dim, a_dim),
    ]
    states = jax.random.normal(k_state, (batch, s_dim), jnp.float32)

    params_np = [(np.asarray(w), np.asarray(b)) for w, b in params]
    ref = _reference_forward(np.asarray(states), params_np)

    # ---- exact f32 MXU path (default): matches the PyTorch module tightly ----
    w_f32 = prepare_params(params_np, mxu_dtype=jnp.float32)
    probs = jax.block_until_ready(
        pi_net_forward_batched(states, w_f32, a_dim=a_dim))
    assert probs.shape == (batch, a_dim)
    assert np.allclose(np.asarray(probs), ref, atol=1e-5, rtol=1e-5), (probs, ref)
    assert np.allclose(np.asarray(probs).sum(-1), 1.0, atol=1e-5)

    # ---- bf16 MXU fast path (perf mode; bf16-appropriate tolerance) ----
    w_bf16 = prepare_params(params_np, mxu_dtype=jnp.bfloat16)
    probs_bf = jax.block_until_ready(
        pi_net_forward_batched(states, w_bf16, a_dim=a_dim))
    assert probs_bf.shape == (batch, a_dim)
    assert np.allclose(np.asarray(probs_bf), ref, atol=2e-2, rtol=0.0), (probs_bf, ref)

    # ---- single 1-D state (the PyTorch module's forward semantics) ----
    p1 = jax.block_until_ready(pi_net_forward(states[0], w_f32, a_dim))
    assert p1.shape == (a_dim,)
    assert np.allclose(np.asarray(p1), ref[0], atol=1e-5, rtol=1e-5), (p1, ref[0])

    print("KERNEL_OK")
</pallas_src>

<mosaic_0001>
module attributes {stable_mosaic.version = 11 : i64} {
  func.func @_pi_net_kernel(%arg0: i32, %arg1: memref<8x2xf32, #tpu.memory_space<vmem>>, %arg2: memref<4x128x128xf32, #tpu.memory_space<vmem>>, %arg3: memref<8x128xf32, #tpu.memory_space<vmem>>) attributes {dimension_semantics = [#tpu.dimension_semantics<parallel>], iteration_bounds = array<i64: 1>, scalar_prefetch = 0 : i64, scratch_operands = 0 : i64, tpu.core_type = #tpu.core_type<tc>, window_params = [{transform_indices = @transform_0, window_bounds = array<i64: 8, 2>}, {pipeline_mode = #tpu.pipeline_mode<synchronous>, transform_indices = @transform_1, window_bounds = array<i64: 4, 128, 128>}, {transform_indices = @transform_2, window_bounds = array<i64: 8, 128>}]} {
    %c0 = arith.constant 0 : index
    %c0_0 = arith.constant 0 : index
    %0 = vector.load %arg1[%c0, %c0_0] : memref<8x2xf32, #tpu.memory_space<vmem>>, vector<8x2xf32>
    %c0_1 = arith.constant 0 : index
    %c127 = arith.constant 127 : index
    %c0_2 = arith.constant 0 : index
    %1 = vector.load %arg2[%c0_1, %c127, %c0_2] : memref<4x128x128xf32, #tpu.memory_space<vmem>>, vector<1x1x128xf32>
    %2 = vector.shape_cast %1 : vector<1x1x128xf32> to vector<1x128xf32>
    %3 = vector.extract_strided_slice %0 {offsets = [0, 0], sizes = [8, 1], strides = [1, 1]} : vector<8x2xf32> to vector<8x1xf32>
    %c0_3 = arith.constant 0 : index
    %c0_4 = arith.constant 0 : index
    %c0_5 = arith.constant 0 : index
    %4 = vector.load %arg2[%c0_3, %c0_4, %c0_5] : memref<4x128x128xf32, #tpu.memory_space<vmem>>, vector<1x1x128xf32>
    %5 = vector.shape_cast %4 : vector<1x1x128xf32> to vector<1x128xf32>
    %6 = vector.broadcast %3 : vector<8x1xf32> to vector<8x128xf32>
    %7 = vector.broadcast %5 : vector<1x128xf32> to vector<8x128xf32>
    %8 = arith.mulf %6, %7 : vector<8x128xf32>
    %9 = vector.broadcast %2 : vector<1x128xf32> to vector<8x128xf32>
    %10 = arith.addf %9, %8 : vector<8x128xf32>
    %11 = vector.extract_strided_slice %0 {offsets = [0, 1], sizes = [8, 1], strides = [1, 1]} : vector<8x2xf32> to vector<8x1xf32>
    %c0_6 = arith.constant 0 : index
    %c1 = arith.constant 1 : index
    %c0_7 = arith.constant 0 : index
    %12 = vector.load %arg2[%c0_6, %c1, %c0_7] : memref<4x128x128xf32, #tpu.memory_space<vmem>>, vector<1x1x128xf32>
    %13 = vector.shape_cast %12 : vector<1x1x128xf32> to vector<1x128xf32>
    %14 = vector.broadcast %11 : vector<8x1xf32> to vector<8x128xf32>
    %15 = vector.broadcast %13 : vector<1x128xf32> to vector<8x128xf32>
    %16 = arith.mulf %14, %15 : vector<8x128xf32>
    %17 = arith.addf %10, %16 : vector<8x128xf32>
    %cst = arith.constant 0.000000e+00 : f32
    %18 = vector.broadcast %cst : f32 to vector<8x128xf32>
    %19 = arith.maximumf %17, %18 : vector<8x128xf32>
    %c1_8 = arith.constant 1 : index
    %c0_9 = arith.constant 0 : index
    %c0_10 = arith.constant 0 : index
    %20 = vector.load %arg2[%c1_8, %c0_9, %c0_10] : memref<4x128x128xf32, #tpu.memory_space<vmem>>, vector<1x128x128xf32>
    %21 = vector.shape_cast %20 : vector<1x128x128xf32> to vector<128x128xf32>
    %cst_11 = arith.constant dense<0.000000e+00> : vector<8x128xf32>
    %22 = tpu.matmul %19, %21, %cst_11 {dimension_numbers = #tpu.dot_dimension_numbers<[1], [0], [0], [1], [0, 0, 1, 1], [], []>} : vector<8x128xf32>, vector<128x128xf32>, vector<8x128xf32> -> vector<8x128xf32>
    %cst_12 = arith.constant 0.000000e+00 : f32
    %23 = vector.broadcast %cst_12 : f32 to vector<8x128xf32>
    %24 = arith.maximumf %22, %23 : vector<8x128xf32>
    %c2 = arith.constant 2 : index
    %c0_13 = arith.constant 0 : index
    %c0_14 = arith.constant 0 : index
    %25 = vector.load %arg2[%c2, %c0_13, %c0_14] : memref<4x128x128xf32, #tpu.memory_space<vmem>>, vector<1x128x128xf32>
    %26 = vector.shape_cast %25 : vector<1x128x128xf32> to vector<128x128xf32>
    %cst_15 = arith.constant dense<0.000000e+00> : vector<8x128xf32>
    %27 = tpu.matmul %24, %26, %cst_15 {dimension_numbers = #tpu.dot_dimension_numbers<[1], [0], [0], [1], [0, 0, 1, 1], [], []>} : vector<8x128xf32>, vector<128x128xf32>, vector<8x128xf32> -> vector<8x128xf32>
    %cst_16 = arith.constant 0.000000e+00 : f32
    %28 = vector.broadcast %cst_16 : f32 to vector<8x128xf32>
    %29 = arith.maximumf %27, %28 : vector<8x128xf32>
    %c3 = arith.constant 3 : index
    %c0_17 = arith.constant 0 : index
    %c0_18 = arith.constant 0 : index
    %30 = vector.load %arg2[%c3, %c0_17, %c0_18] : memref<4x128x128xf32, #tpu.memory_space<vmem>>, vector<1x128x128xf32>
    %31 = vector.shape_cast %30 : vector<1x128x128xf32> to vector<128x128xf32>
    %cst_19 = arith.constant dense<0.000000e+00> : vector<8x128xf32>
    %32 = tpu.matmul %29, %31, %cst_19 {dimension_numbers = #tpu.dot_dimension_numbers<[1], [0], [0], [1], [0, 0, 1, 1], [], []>} : vector<8x128xf32>, vector<128x128xf32>, vector<8x128xf32> -> vector<8x128xf32>
    %33 = tpu.iota {dimensions = array<i32: 1>} : vector<8x128xi32>
    %c3_i32 = arith.constant 3 : i32
    %34 = vector.broadcast %c3_i32 : i32 to vector<8x128xi32>
    %35 = arith.cmpi slt, %33, %34 : vector<8x128xi32>
    %cst_20 = arith.constant 0xFF800000 : f32
    %36 = vector.broadcast %cst_20 : f32 to vector<8x128xf32>
    %37 = arith.select %35, %32, %36 : vector<8x128xi1>, vector<8x128xf32>
    %cst_21 = arith.constant dense<0xFF800000> : vector<8xf32>
    %38 = vector.multi_reduction <maximumf>, %37, %cst_21 [1] : vector<8x128xf32> to vector<8xf32>
    %39 = vector.shape_cast %38 : vector<8xf32> to vector<8x1xf32>
    %40 = vector.broadcast %39 : vector<8x1xf32> to vector<8x128xf32>
    %41 = arith.subf %37, %40 : vector<8x128xf32>
    %42 = math.exp %41 : vector<8x128xf32>
    %cst_22 = arith.constant 0.000000e+00 : f32
    %43 = vector.broadcast %cst_22 : f32 to vector<8x128xf32>
    %44 = arith.select %35, %42, %43 : vector<8x128xi1>, vector<8x128xf32>
    %cst_23 = arith.constant dense<0.000000e+00> : vector<8xf32>
    %45 = vector.multi_reduction <add>, %44, %cst_23 [1] : vector<8x128xf32> to vector<8xf32>
    %46 = vector.shape_cast %45 : vector<8xf32> to vector<8x1xf32>
    %47 = tpu.reciprocal %46 {approx = true} : vector<8x1xf32> -> vector<8x1xf32>
    %48 = arith.mulf %46, %47 : vector<8x1xf32>
    %cst_24 = arith.constant 2.000000e+00 : f32
    %49 = vector.broadcast %cst_24 : f32 to vector<8x1xf32>
    %50 = arith.subf %49, %48 : vector<8x1xf32>
    %51 = arith.mulf %47, %50 : vector<8x1xf32>
    %52 = arith.mulf %46, %51 : vector<8x1xf32>
    %cst_25 = arith.constant 2.000000e+00 : f32
    %53 = vector.broadcast %cst_25 : f32 to vector<8x1xf32>
    %54 = arith.subf %53, %52 : vector<8x1xf32>
    %55 = arith.mulf %51, %54 : vector<8x1xf32>
    %56 = vector.broadcast %55 : vector<8x1xf32> to vector<8x128xf32>
    %57 = arith.mulf %44, %56 : vector<8x128xf32>
    %c0_26 = arith.constant 0 : index
    %c0_27 = arith.constant 0 : index
    %58 = vector.load %arg3[%c0_26, %c0_27] : memref<8x128xf32, #tpu.memory_space<vmem>>, vector<8x128xf32>
    tpu.vector_store %arg3[%c0_26, %c0_27], %57 {strides = array<i32>} : memref<8x128xf32, #tpu.memory_space<vmem>>, vector<8x128xf32>,
    return
  }
  func.func @transform_0(%arg0: i32) -> (i32, i32) {
    %c0_i32 = arith.constant 0 : i32
    %c0_i32_0 = arith.constant 0 : i32
    return %arg0, %c0_i32 : i32, i32
  }
  func.func @transform_1(%arg0: i32) -> (i32, i32, i32) {
    %c0_i32 = arith.constant 0 : i32
    %c0_i32_0 = arith.constant 0 : i32
    %c0_i32_1 = arith.constant 0 : i32
    %c0_i32_2 = arith.constant 0 : i32
    return %c0_i32, %c0_i32_0, %c0_i32_1 : i32, i32, i32
  }
  func.func @transform_2(%arg0: i32) -> (i32, i32) {
    %c0_i32 = arith.constant 0 : i32
    %c0_i32_0 = arith.constant 0 : i32
    return %arg0, %c0_i32 : i32, i32
  }
}

</mosaic_0001>

<llo_original>
// kernel: pi_net_forward_batched.1
$region0: #{pi_net_forward_batched.1}
  #allocation0 [shape = 'u32[]', space=smem, size = 0x4, offset = 0x4, fixed_abs, tag = 'smem constant byte address 0x4 - core index']
  #allocation1 [shape = 'u32[144,128]{1,0:T(1,128)}', space=vmem, size = 0x12000, scoped, tag = 'internal scratch']
  %s0 = inlined_call_operand.vmem [shape: f32[8,2], index: 0, kind: input, shape index: {}]
  %s1 = inlined_call_operand.hbm [shape: f32[4,128,128], index: 1, kind: input, shape index: {}]
  %s2 = inlined_call_operand.vmem [shape: f32[8,128], index: 2, kind: output, shape index: {}]
  %s3 = sld [smem:[#allocation0]]
  $region22: #{pi_net_forward_batched.1} parent=0
    _
  %s5 = ssub.s32 1, %s3
  %s6 = scalar_select 0, %s5, %s3
  $region1: #{pi_net_forward_batched.1} parent=0
    #allocation2 [shape = 'u8[262144]{0}', space=vmem, size = 0x40000, scoped, tag = 'input window, operand 1, single buffered']
    #allocation3 [shape = 's32[1]{0}', space=sflag, size = 0x4, scoped, tag = 'scoped memory for pi_net_forward_batched.1']
    %7 = vsyncpa [#allocation3], 0
    // Predicated region
    $region2: #{pi_net_forward_batched.1} parent=1 // pred_check
      _
    $region3: #{pi_net_forward_batched.1} parent=1 // pred_check_branch
      %9 = sbr.rel (0) target = $region5
    $region4: #{pi_net_forward_batched.1} parent=1 // pred_region
      _
    $region5: #{pi_net_forward_batched.1} parent=1 // pred_fallthru
      _
    // Predicated region
    $region6: #{pi_net_forward_batched.1} parent=1 // pred_check
      _
    $region7: #{pi_net_forward_batched.1} parent=1 // pred_check_branch
      %11 = sbr.rel (0) target = $region9
    $region8: #{pi_net_forward_batched.1} parent=1 // pred_region
      %s13 = ssub.s32 8192, 8192
      %14 = vsyncadd [#allocation3], %s13
      %s15 = sshll.u32 [#allocation2], 4
      %s16 = int_to_ptr.vmem [resolvable:$true] %s15
      %21 = dma.hbm_to_vmem [thread:$0]  %s1, 8192, %s16, [#allocation3], 128, 128, 8
    $region9: #{pi_net_forward_batched.1} parent=1 // pred_fallthru
      _
    // Predicated region
    $region10: #{pi_net_forward_batched.1} parent=1 // pred_check
      _
    $region11: #{pi_net_forward_batched.1} parent=1 // pred_check_branch
      %23 = sbr.rel (0) target = $region13
    $region12: #{pi_net_forward_batched.1} parent=1 // pred_region
      %24 = dma.done [#allocation3], 8192
    $region13: #{pi_net_forward_batched.1} parent=1 // pred_fallthru
      _
    %v25 = vld [vmem:[%s0] sm:$0xff]
    %v26 = vld [vmem:[#allocation2 + $0x7f] sm:$0x1]
    %v27 = vld [vmem:[#allocation2] sm:$0x1]
    %29 = vset.pattern.permute.xlu0 0
    %30 = vperm.xlu0 %29, %v25
    %v31 = vpop.permute.xlu0 %30
    %v33 = vlaneseq
    %v34 = vshrl.u32 %v33, 7
    %v35 = vsub.s32 0, %v34
    %v36 = vrot.slane %v27, %v35
    %v37 = vmul.f32 %v31, %v36
    %v38 = vlaneseq
    %v39 = vshrl.u32 %v38, 7
    %v40 = vsub.s32 0, %v39
    %v41 = vrot.slane %v26, %v40
    %v42 = vadd.f32 %v41, %v37
    %v43 = vld [vmem:[#allocation2 + $0x1] sm:$0x1]
    %44 = vset.pattern.permute.xlu0 1
    %45 = vperm.xlu0 %44, %v25
    %v46 = vpop.permute.xlu0 %45
    %v48 = vlaneseq
    %v49 = vshrl.u32 %v48, 7
    %v50 = vsub.s32 0, %v49
    %v51 = vrot.slane %v43, %v50
    %v52 = vmul.f32 %v46, %v51
    %v53 = vadd.f32 %v42, %v52
    %v54 = vmax.f32 %v53, 0.0
    %s55 = scalar_lea.vmem [#allocation2], 128
    %v56 = vld [vmem:[%s55] sm:$0xff]
    %v57 = vld [vmem:[%s55 + $0x8] sm:$0xff]
    %v58 = vld [vmem:[%s55 + $0x10] sm:$0xff]
    %v59 = vld [vmem:[%s55 + $0x18] sm:$0xff]
    %v60 = vld [vmem:[%s55 + $0x20] sm:$0xff]
    %v61 = vld [vmem:[%s55 + $0x28] sm:$0xff]
    %v62 = vld [vmem:[%s55 + $0x30] sm:$0xff]
    %v63 = vld [vmem:[%s55 + $0x38] sm:$0xff]
    %v64 = vld [vmem:[%s55 + $0x40] sm:$0xff]
    %v65 = vld [vmem:[%s55 + $0x48] sm:$0xff]
    %v66 = vld [vmem:[%s55 + $0x50] sm:$0xff]
    %v67 = vld [vmem:[%s55 + $0x58] sm:$0xff]
    %v68 = vld [vmem:[%s55 + $0x60] sm:$0xff]
    %v69 = vld [vmem:[%s55 + $0x68] sm:$0xff]
    %v70 = vld [vmem:[%s55 + $0x70] sm:$0xff]
    %v71 = vld [vmem:[%s55 + $0x78] sm:$0xff]
    %72 = vmatprep.subr.mxu0 0.0
    %73 = vmatpush1.msra.mxu0 %v56
    %74 = vmatprep.subr.mxu0 0.0
    %75 = vmatpush1.msra.mxu0 %v57
    %76 = vmatprep.subr.mxu0 0.0
    %77 = vmatpush1.msra.mxu0 %v58
    %78 = vmatprep.subr.mxu0 0.0
    %79 = vmatpush1.msra.mxu0 %v59
    %80 = vmatprep.subr.mxu0 0.0
    %81 = vmatpush1.msra.mxu0 %v60
    %82 = vmatprep.subr.mxu0 0.0
    %83 = vmatpush1.msra.mxu0 %v61
    %84 = vmatprep.subr.mxu0 0.0
    %85 = vmatpush1.msra.mxu0 %v62
    %86 = vmatprep.subr.mxu0 0.0
    %87 = vmatpush1.msra.mxu0 %v63
    %88 = vmatprep.subr.mxu0 0.0
    %89 = vmatpush1.msra.mxu0 %v64
    %90 = vmatprep.subr.mxu0 0.0
    %91 = vmatpush1.msra.mxu0 %v65
    %92 = vmatprep.subr.mxu0 0.0
    %93 = vmatpush1.msra.mxu0 %v66
    %94 = vmatprep.subr.mxu0 0.0
    %95 = vmatpush1.msra.mxu0 %v67
    %96 = vmatprep.subr.mxu0 0.0
    %97 = vmatpush1.msra.mxu0 %v68
    %98 = vmatprep.subr.mxu0 0.0
    %99 = vmatpush1.msra.mxu0 %v69
    %100 = vmatprep.subr.mxu0 0.0
    %101 = vmatpush1.msra.mxu0 %v70
    %102 = vmatprep.subr.mxu0 0.0
    %103 = vmatpush1.msra.mxu0 %v71
    %104 = vmatprep.subr.mxu0 0.0
    %105 = vmatpush1.msra.mxu0 0.0
    %106 = vmatprep.subr.mxu0 0.0
    %107 = vmatpush1.msra.mxu0 0.0
    %108 = vmatprep.subr.mxu0 0.0
    %109 = vmatpush1.msra.mxu0 0.0
    %110 = vmatprep.subr.mxu0 0.0
    %111 = vmatpush1.msra.mxu0 0.0
    %112 = vmatprep.subr.mxu0 0.0
    %113 = vmatpush1.msra.mxu0 0.0
    %114 = vmatprep.subr.mxu0 0.0
    %115 = vmatpush1.msra.mxu0 0.0
    %116 = vmatprep.subr.mxu0 0.0
    %117 = vmatpush1.msra.mxu0 0.0
    %118 = vmatprep.subr.mxu0 0.0
    %119 = vmatpush1.msra.mxu0 0.0
    %120 = vmatprep.subr.mxu0 0.0
    %121 = vmatpush1.msra.mxu0 0.0
    %122 = vmatprep.subr.mxu0 0.0
    %123 = vmatpush1.msra.mxu0 0.0
    %124 = vmatprep.subr.mxu0 0.0
    %125 = vmatpush1.msra.mxu0 0.0
    %126 = vmatprep.subr.mxu0 0.0
    %127 = vmatpush1.msra.mxu0 0.0
    %128 = vmatprep.subr.mxu0 0.0
    %129 = vmatpush1.msra.mxu0 0.0
    %130 = vmatprep.subr.mxu0 0.0
    %131 = vmatpush1.msra.mxu0 0.0
    %132 = vmatprep.subr.mxu0 0.0
    %133 = vmatpush1.msra.mxu0 0.0
    %134 = vmatprep.subr.mxu0 0.0
    %135 = vmatpush1.msra.mxu0 0.0
    %136 = vmatprep.mubr.f32.mxu0 0.0
    %137 = vmatmul.mubr.f32.gmra.mrb[0].mxu0 %v54
    %v138 = vpop.f32.mrb[0].mxu0
    %v139 = vadd.f32 0.0, %v138
    %v140 = vpop.f32.mrb[0].mxu0
    %141 = vdwg.mxu0
    %v142 = vmax.f32 %v139, 0.0
    %s143 = scalar_lea.vmem [#allocation2], 256
    %v144 = vld [vmem:[%s143] sm:$0xff]
    %v145 = vld [vmem:[%s143 + $0x8] sm:$0xff]
    %v146 = vld [vmem:[%s143 + $0x10] sm:$0xff]
    %v147 = vld [vmem:[%s143 + $0x18] sm:$0xff]
    %v148 = vld [vmem:[%s143 + $0x20] sm:$0xff]
    %v149 = vld [vmem:[%s143 + $0x28] sm:$0xff]
    %v150 = vld [vmem:[%s143 + $0x30] sm:$0xff]
    %v151 = vld [vmem:[%s143 + $0x38] sm:$0xff]
    %v152 = vld [vmem:[%s143 + $0x40] sm:$0xff]
    %v153 = vld [vmem:[%s143 + $0x48] sm:$0xff]
    %v154 = vld [vmem:[%s143 + $0x50] sm:$0xff]
    %v155 = vld [vmem:[%s143 + $0x58] sm:$0xff]
    %v156 = vld [vmem:[%s143 + $0x60] sm:$0xff]
    %v157 = vld [vmem:[%s143 + $0x68] sm:$0xff]
    %v158 = vld [vmem:[%s143 + $0x70] sm:$0xff]
    %v159 = vld [vmem:[%s143 + $0x78] sm:$0xff]
    %160 = vmatprep.subr.mxu0 0.0
    %161 = vmatpush1.msra.mxu0 %v144
    %162 = vmatprep.subr.mxu0 0.0
    %163 = vmatpush1.msra.mxu0 %v145
    %164 = vmatprep.subr.mxu0 0.0
    %165 = vmatpush1.msra.mxu0 %v146
    %166 = vmatprep.subr.mxu0 0.0
    %167 = vmatpush1.msra.mxu0 %v147
    %168 = vmatprep.subr.mxu0 0.0
    %169 = vmatpush1.msra.mxu0 %v148
    %170 = vmatprep.subr.mxu0 0.0
    %171 = vmatpush1.msra.mxu0 %v149
    %172 = vmatprep.subr.mxu0 0.0
    %173 = vmatpush1.msra.mxu0 %v150
    %174 = vmatprep.subr.mxu0 0.0
    %175 = vmatpush1.msra.mxu0 %v151
    %176 = vmatprep.subr.mxu0 0.0
    %177 = vmatpush1.msra.mxu0 %v152
    %178 = vmatprep.subr.mxu0 0.0
    %179 = vmatpush1.msra.mxu0 %v153
    %180 = vmatprep.subr.mxu0 0.0
    %181 = vmatpush1.msra.mxu0 %v154
    %182 = vmatprep.subr.mxu0 0.0
    %183 = vmatpush1.msra.mxu0 %v155
    %184 = vmatprep.subr.mxu0 0.0
    %185 = vmatpush1.msra.mxu0 %v156
    %186 = vmatprep.subr.mxu0 0.0
    %187 = vmatpush1.msra.mxu0 %v157
    %188 = vmatprep.subr.mxu0 0.0
    %189 = vmatpush1.msra.mxu0 %v158
    %190 = vmatprep.subr.mxu0 0.0
    %191 = vmatpush1.msra.mxu0 %v159
    %192 = vmatprep.subr.mxu0 0.0
    %193 = vmatpush1.msra.mxu0 0.0
    %194 = vmatprep.subr.mxu0 0.0
    %195 = vmatpush1.msra.mxu0 0.0
    %196 = vmatprep.subr.mxu0 0.0
    %197 = vmatpush1.msra.mxu0 0.0
    %198 = vmatprep.subr.mxu0 0.0
    %199 = vmatpush1.msra.mxu0 0.0
    %200 = vmatprep.subr.mxu0 0.0
    %201 = vmatpush1.msra.mxu0 0.0
    %202 = vmatprep.subr.mxu0 0.0
    %203 = vmatpush1.msra.mxu0 0.0
    %204 = vmatprep.subr.mxu0 0.0
    %205 = vmatpush1.msra.mxu0 0.0
    %206 = vmatprep.subr.mxu0 0.0
    %207 = vmatpush1.msra.mxu0 0.0
    %208 = vmatprep.subr.mxu0 0.0
    %209 = vmatpush1.msra.mxu0 0.0
    %210 = vmatprep.subr.mxu0 0.0
    %211 = vmatpush1.msra.mxu0 0.0
    %212 = vmatprep.subr.mxu0 0.0
    %213 = vmatpush1.msra.mxu0 0.0
    %214 = vmatprep.subr.mxu0 0.0
    %215 = vmatpush1.msra.mxu0 0.0
    %216 = vmatprep.subr.mxu0 0.0
    %217 = vmatpush1.msra.mxu0 0.0
    %218 = vmatprep.subr.mxu0 0.0
    %219 = vmatpush1.msra.mxu0 0.0
    %220 = vmatprep.subr.mxu0 0.0
    %221 = vmatpush1.msra.mxu0 0.0
    %222 = vmatprep.subr.mxu0 0.0
    %223 = vmatpush1.msra.mxu0 0.0
    %224 = vmatprep.mubr.f32.mxu0 0.0
    %225 = vmatmul.mubr.f32.gmra.mrb[0].mxu0 %v142
    %v226 = vpop.f32.mrb[0].mxu0
    %v227 = vadd.f32 0.0, %v226
    %v228 = vpop.f32.mrb[0].mxu0
    %229 = vdwg.mxu0
    %v230 = vmax.f32 %v227, 0.0
    %s231 = scalar_lea.vmem [#allocation2], 384
    %v232 = vld [vmem:[%s231] sm:$0xff]
    %v233 = vld [vmem:[%s231 + $0x8] sm:$0xff]
    %v234 = vld [vmem:[%s231 + $0x10] sm:$0xff]
    %v235 = vld [vmem:[%s231 + $0x18] sm:$0xff]
    %v236 = vld [vmem:[%s231 + $0x20] sm:$0xff]
    %v237 = vld [vmem:[%s231 + $0x28] sm:$0xff]
    %v238 = vld [vmem:[%s231 + $0x30] sm:$0xff]
    %v239 = vld [vmem:[%s231 + $0x38] sm:$0xff]
    %v240 = vld [vmem:[%s231 + $0x40] sm:$0xff]
    %v241 = vld [vmem:[%s231 + $0x48] sm:$0xff]
    %v242 = vld [vmem:[%s231 + $0x50] sm:$0xff]
    %v243 = vld [vmem:[%s231 + $0x58] sm:$0xff]
    %v244 = vld [vmem:[%s231 + $0x60] sm:$0xff]
    %v245 = vld [vmem:[%s231 + $0x68] sm:$0xff]
    %v246 = vld [vmem:[%s231 + $0x70] sm:$0xff]
    %v247 = vld [vmem:[%s231 + $0x78] sm:$0xff]
    %248 = vmatprep.subr.mxu0 0.0
    %249 = vmatpush1.msra.mxu0 %v232
    %250 = vmatprep.subr.mxu0 0.0
    %251 = vmatpush1.msra.mxu0 %v233
    %252 = vmatprep.subr.mxu0 0.0
    %253 = vmatpush1.msra.mxu0 %v234
    %254 = vmatprep.subr.mxu0 0.0
    %255 = vmatpush1.msra.mxu0 %v235
    %256 = vmatprep.subr.mxu0 0.0
    %257 = vmatpush1.msra.mxu0 %v236
    %258 = vmatprep.subr.mxu0 0.0
    %259 = vmatpush1.msra.mxu0 %v237
    %260 = vmatprep.subr.mxu0 0.0
    %261 = vmatpush1.msra.mxu0 %v238
    %262 = vmatprep.subr.mxu0 0.0
    %263 = vmatpush1.msra.mxu0 %v239
    %264 = vmatprep.subr.mxu0 0.0
    %265 = vmatpush1.msra.mxu0 %v240
    %266 = vmatprep.subr.mxu0 0.0
    %267 = vmatpush1.msra.mxu0 %v241
    %268 = vmatprep.subr.mxu0 0.0
    %269 = vmatpush1.msra.mxu0 %v242
    %270 = vmatprep.subr.mxu0 0.0
    %271 = vmatpush1.msra.mxu0 %v243
    %272 = vmatprep.subr.mxu0 0.0
    %273 = vmatpush1.msra.mxu0 %v244
    %274 = vmatprep.subr.mxu0 0.0
    %275 = vmatpush1.msra.mxu0 %v245
    %276 = vmatprep.subr.mxu0 0.0
    %277 = vmatpush1.msra.mxu0 %v246
    %278 = vmatprep.subr.mxu0 0.0
    %279 = vmatpush1.msra.mxu0 %v247
    %280 = vmatprep.subr.mxu0 0.0
    %281 = vmatpush1.msra.mxu0 0.0
    %282 = vmatprep.subr.mxu0 0.0
    %283 = vmatpush1.msra.mxu0 0.0
    %284 = vmatprep.subr.mxu0 0.0
    %285 = vmatpush1.msra.mxu0 0.0
    %286 = vmatprep.subr.mxu0 0.0
    %287 = vmatpush1.msra.mxu0 0.0
    %288 = vmatprep.subr.mxu0 0.0
    %289 = vmatpush1.msra.mxu0 0.0
    %290 = vmatprep.subr.mxu0 0.0
    %291 = vmatpush1.msra.mxu0 0.0
    %292 = vmatprep.subr.mxu0 0.0
    %293 = vmatpush1.msra.mxu0 0.0
    %294 = vmatprep.subr.mxu0 0.0
    %295 = vmatpush1.msra.mxu0 0.0
    %296 = vmatprep.subr.mxu0 0.0
    %297 = vmatpush1.msra.mxu0 0.0
    %298 = vmatprep.subr.mxu0 0.0
    %299 = vmatpush1.msra.mxu0 0.0
    %300 = vmatprep.subr.mxu0 0.0
    %301 = vmatpush1.msra.mxu0 0.0
    %302 = vmatprep.subr.mxu0 0.0
    %303 = vmatpush1.msra.mxu0 0.0
    %304 = vmatprep.subr.mxu0 0.0
    %305 = vmatpush1.msra.mxu0 0.0
    %306 = vmatprep.subr.mxu0 0.0
    %307 = vmatpush1.msra.mxu0 0.0
    %308 = vmatprep.subr.mxu0 0.0
    %309 = vmatpush1.msra.mxu0 0.0
    %310 = vmatprep.subr.mxu0 0.0
    %311 = vmatpush1.msra.mxu0 0.0
    %312 = vmatprep.mubr.f32.mxu0 0.0
    %313 = vmatmul.mubr.f32.gmra.mrb[0].mxu0 %v230
    %v314 = vpop.f32.mrb[0].mxu0
    %v315 = vadd.f32 0.0, %v314
    %v316 = vpop.f32.mrb[0].mxu0
    %317 = vdwg.mxu0
    %v318 = vlaneseq
    %v319 = vand.u32 %v318, 127
    %vm320 = vcmp.lt.s32.totalorder %v319, 3
    %v321 = vsel %vm320, %v315, -inf
    %322 = vmax.xlane.f32.xlu0 %v321
    %v323 = vpop.xlane.xlu0 %322
    %v324 = vsub.f32 %v321, %v323
    %v325 = vmul.f32 %v324, 1.442695
    %v326 = vpow.pop %v325
    %v327 = vsel %vm320, %v326, 0.0
    %328 = vadd.xlane.f32.xlu0 %v327
    %v329 = vpop.xlane.xlu0 %328
    %v330 = vrcp.pop %v329
    %v331 = vmul.f32 %v329, %v330
    %v332 = vsub.f32 2.0, %v331
    %v333 = vmul.f32 %v330, %v332
    %v334 = vmul.f32 %v329, %v333
    %v335 = vsub.f32 2.0, %v334
    %v336 = vmul.f32 %v333, %v335
    %v337 = vmul.f32 %v327, %v336
    %338 = vst [vmem:[%s2] sm:$0xff] %v337
    // Predicated region
    $region14: #{pi_net_forward_batched.1} parent=1 // pred_check
      _
    $region15: #{pi_net_forward_batched.1} parent=1 // pred_check_branch
      %340 = sbr.rel (0) target = $region17
    $region16: #{pi_net_forward_batched.1} parent=1 // pred_region
      _
    $region17: #{pi_net_forward_batched.1} parent=1 // pred_fallthru
      _
    // Predicated region
    $region18: #{pi_net_forward_batched.1} parent=1 // pred_check
      _
    $region19: #{pi_net_forward_batched.1} parent=1 // pred_check_branch
      %342 = sbr.rel (0) target = $region21
    $region20: #{pi_net_forward_batched.1} parent=1 // pred_region
      _
    $region21: #{pi_net_forward_batched.1} parent=1 // pred_fallthru
      _
    %343 = vsyncpa [#allocation3], 1

</llo_original>
